<compile_context>
chip_gen: v7x
topology: tpu7x:2x2x1
jax: 0.10.0
libtpu: 0.0.40
codegen_flags: <defaults>
</compile_context>

<pallas_src>
import jax
import jax.numpy as jnp
from jax.experimental import pallas as pl
from jax.experimental.pallas import tpu as pltpu


def model_kernel(x_ref, wf_ref, b_ref, o_ref):
    # x_ref:  (B, F)      flattened input
    # wf_ref: (F, OUT)    folded (W[:, :F] + W[:, F:]) and pre-transposed weight
    # b_ref:  (1, OUT)    bias
    # o_ref:  (B, OUT)    output
    x = x_ref[...]
    # s = sigmoid(relu(tanh(x)))  -- elementwise chain on x only (concat folded away)
    s = jax.nn.sigmoid(jnp.maximum(jnp.tanh(x), 0.0))
    # y = s @ W_folded + b  (weight already transposed outside; MXU-natural layout)
    y = jnp.dot(s, wf_ref[...], preferred_element_type=jnp.float32) + b_ref[...]
    o_ref[...] = y.astype(o_ref.dtype)


def prepare_params(w, b):
    """One-time parameter preprocessing, hoisted out of the per-call forward path.

    w: (OUT, 2*F)  PyTorch-layout Linear weight
    b: (OUT,)      Linear bias
    Returns (w_folded: (F, OUT), b2: (1, OUT)).
    """
    out_features, in2 = w.shape
    f = in2 // 2
    w_folded = (w[:, :f] + w[:, f:]).T          # fold duplicated concat halves + pre-transpose
    b2 = b.reshape(1, out_features)
    return jax.device_put(w_folded), jax.device_put(b2)


@jax.jit
def model_forward(x, w_folded, b2):
    # x: (B, C, W)    w_folded: (F, OUT)    b2: (1, OUT)
    B, C, W = x.shape
    F = C * W
    OUT = w_folded.shape[1]

    x_flat = x.reshape(B, F)

    # Scheduling hint: this kernel is tiny (one vmatmul + ~2*B*F transcendentals);
    # tell XLA so it overlaps the custom call with surrounding work.
    cost = pl.CostEstimate(
        flops=2 * B * F * OUT + B * OUT,
        transcendentals=2 * B * F,
        bytes_accessed=4 * (B * F + F * OUT + OUT + B * OUT),
    )

    # Whole problem fits in a few vregs; a single full-extent block (no grid) is
    # optimal here — launch/DMA fixed cost dominates at this shape. A batch-parallel
    # grid + lane-dense output layout only becomes worthwhile if B scales into the
    # hundreds/thousands.
    vmem = pltpu.MemorySpace.VMEM
    return pl.pallas_call(
        model_kernel,
        out_shape=jax.ShapeDtypeStruct((B, OUT), x.dtype),
        in_specs=[
            pl.BlockSpec((B, F), lambda: (0, 0), memory_space=vmem),
            pl.BlockSpec((F, OUT), lambda: (0, 0), memory_space=vmem),
            pl.BlockSpec((1, OUT), lambda: (0, 0), memory_space=vmem),
        ],
        out_specs=pl.BlockSpec((B, OUT), lambda: (0, 0), memory_space=vmem),
        cost_estimate=cost,
    )(x_flat, w_folded, b2)


def reference_forward(x, w, b):
    # Direct translation of the PyTorch forward (with the (24,5) Linear fix).
    B = x.shape[0]
    t1 = jnp.concatenate([x, x], axis=1)          # (B, 2C, W)
    t2 = jnp.tanh(t1.reshape(B, -1))              # (B, 2CW)
    t4 = jnp.maximum(t2, 0.0)
    t5 = jax.nn.sigmoid(t4)
    return t5 @ w.T + b


if __name__ == "__main__":
    key = jax.random.PRNGKey(0)
    kx, kw, kb = jax.random.split(key, 3)

    B, C, W = 2, 3, 4
    IN_FEATURES = 2 * C * W   # 24
    OUT_FEATURES = 5

    x = jax.random.normal(kx, (B, C, W), dtype=jnp.float32)

    # Deterministic Linear init (PyTorch-style uniform(-1/sqrt(fan_in), 1/sqrt(fan_in)))
    bound = 1.0 / (IN_FEATURES ** 0.5)
    w = jax.random.uniform(kw, (OUT_FEATURES, IN_FEATURES), jnp.float32, -bound, bound)
    b = jax.random.uniform(kb, (OUT_FEATURES,), jnp.float32, -bound, bound)

    # One-time parameter preprocessing (hoisted out of the forward path).
    w_folded, b2 = prepare_params(w, b)
    jax.block_until_ready((w_folded, b2))

    out = model_forward(x, w_folded, b2)
    jax.block_until_ready(out)

    ref = reference_forward(x, w, b)
    assert out.shape == (B, OUT_FEATURES)
    assert jnp.allclose(out, ref, atol=1e-5, rtol=1e-5), "mismatch vs reference"

    print("KERNEL_OK")
</pallas_src>

<mosaic_0001>
module attributes {stable_mosaic.version = 11 : i64} {
  func.func @model_kernel(%arg0: memref<2x12xf32, #tpu.memory_space<vmem>>, %arg1: memref<12x5xf32, #tpu.memory_space<vmem>>, %arg2: memref<1x5xf32, #tpu.memory_space<vmem>>, %arg3: memref<2x5xf32, #tpu.memory_space<vmem>>) attributes {dimension_semantics = [], scalar_prefetch = 0 : i64, scratch_operands = 0 : i64, tpu.core_type = #tpu.core_type<tc>} {
    %c0 = arith.constant 0 : index
    %c0_0 = arith.constant 0 : index
    %0 = vector.load %arg0[%c0, %c0_0] : memref<2x12xf32, #tpu.memory_space<vmem>>, vector<2x12xf32>
    %1 = math.tanh %0 : vector<2x12xf32>
    %cst = arith.constant 0.000000e+00 : f32
    %2 = vector.broadcast %cst : f32 to vector<2x12xf32>
    %3 = arith.maximumf %1, %2 : vector<2x12xf32>
    %4 = arith.negf %3 : vector<2x12xf32>
    %5 = math.exp %4 : vector<2x12xf32>
    %cst_1 = arith.constant 1.000000e+00 : f32
    %6 = vector.broadcast %cst_1 : f32 to vector<2x12xf32>
    %7 = arith.addf %6, %5 : vector<2x12xf32>
    %8 = arith.divf %6, %7 : vector<2x12xf32>
    %c0_2 = arith.constant 0 : index
    %c0_3 = arith.constant 0 : index
    %9 = vector.load %arg1[%c0_2, %c0_3] : memref<12x5xf32, #tpu.memory_space<vmem>>, vector<12x5xf32>
    %cst_4 = arith.constant dense<0.000000e+00> : vector<2x5xf32>
    %10 = tpu.matmul %8, %9, %cst_4 {dimension_numbers = #tpu.dot_dimension_numbers<[1], [0], [0], [1], [0, 0, 1, 1], [], []>} : vector<2x12xf32>, vector<12x5xf32>, vector<2x5xf32> -> vector<2x5xf32>
    %c0_5 = arith.constant 0 : index
    %c0_6 = arith.constant 0 : index
    %11 = vector.load %arg2[%c0_5, %c0_6] : memref<1x5xf32, #tpu.memory_space<vmem>>, vector<1x5xf32>
    %12 = vector.broadcast %11 : vector<1x5xf32> to vector<2x5xf32>
    %13 = arith.addf %10, %12 : vector<2x5xf32>
    %c0_7 = arith.constant 0 : index
    %c0_8 = arith.constant 0 : index
    %14 = vector.load %arg3[%c0_7, %c0_8] : memref<2x5xf32, #tpu.memory_space<vmem>>, vector<2x5xf32>
    tpu.vector_store %arg3[%c0_7, %c0_8], %13 {strides = array<i32>} : memref<2x5xf32, #tpu.memory_space<vmem>>, vector<2x5xf32>,
    return
  }
}

</mosaic_0001>

<llo_original>
// kernel: model_forward.1
$region0: #{model_forward.1}
  #allocation0 [shape = 'u32[]', space=smem, size = 0x4, offset = 0x4, fixed_abs, tag = 'smem constant byte address 0x4 - core index']
  #allocation1 [shape = 'u32[144,128]{1,0:T(1,128)}', space=vmem, size = 0x12000, scoped, tag = 'internal scratch']
  %s0 = inlined_call_operand.vmem [shape: f32[2,12], index: 0, kind: input, shape index: {}]
  %s1 = inlined_call_operand.vmem [shape: f32[12,5], index: 1, kind: input, shape index: {}]
  %s2 = inlined_call_operand.vmem [shape: f32[1,5], index: 2, kind: input, shape index: {}]
  %s3 = inlined_call_operand.hbm [shape: f32[2,5], index: 3, kind: output, shape index: {}]
  %s4 = sld [smem:[#allocation0]]
  $region22: #{model_forward.1} parent=0
    _
  %s6 = ssub.s32 1, %s4
  %s7 = scalar_select 0, %s6, %s4
  $region1: #{model_forward.1} parent=0
    #allocation2 [shape = 'u8[1024]{0}', space=vmem, size = 0x400, scoped, tag = 'output window, operand 0, single buffered']
    #allocation3 [shape = 's32[1]{0}', space=sflag, size = 0x4, scoped, tag = 'scoped memory for model_forward.1']
    %8 = vsyncpa [#allocation3], 0
    // Predicated region
    $region2: #{model_forward.1} parent=1 // pred_check
      _
    $region3: #{model_forward.1} parent=1 // pred_check_branch
      %10 = sbr.rel (0) target = $region5
    $region4: #{model_forward.1} parent=1 // pred_region
      _
    $region5: #{model_forward.1} parent=1 // pred_fallthru
      _
    // Predicated region
    $region6: #{model_forward.1} parent=1 // pred_check
      _
    $region7: #{model_forward.1} parent=1 // pred_check_branch
      %12 = sbr.rel (0) target = $region9
    $region8: #{model_forward.1} parent=1 // pred_region
      _
    $region9: #{model_forward.1} parent=1 // pred_fallthru
      _
    // Predicated region
    $region10: #{model_forward.1} parent=1 // pred_check
      _
    $region11: #{model_forward.1} parent=1 // pred_check_branch
      %14 = sbr.rel (0) target = $region13
    $region12: #{model_forward.1} parent=1 // pred_region
      _
    $region13: #{model_forward.1} parent=1 // pred_fallthru
      _
    %v15 = vld [vmem:[%s0] sm:$0x3]
    %v16 = vtanh.pop %v15
    %v17 = vmax.f32 %v16, 0.0
    %v18 = vxor.u32 %v17, 2147483648
    %v19 = vmul.f32 %v18, 1.442695
    %v20 = vpow.pop %v19
    %v21 = vadd.f32 %v20, 1.0
    %v22 = vrcp.pop %v21
    %v23 = vmul.f32 1.0, %v22
    %v24 = vld [vmem:[%s1] sm:$0xff]
    %v25 = vld [vmem:[%s1 + $0x8] sm:$0xf]
    %v26 = vld [vmem:[%s2] sm:$0x1]
    %v28 = vlaneseq
    %v29 = vshrl.u32 %v28, 7
    %v30 = vsub.s32 0, %v29
    %v31 = vrot.slane %v26, %v30
    %vm33 = vcmask 97280
    %v35 = vsel %vm33, %v23, 0
    %vm37 = vcmask 1043456
    %v39 = vsel %vm37, %v25, 0
    %41 = vmatprep.subr.mxu0 0.0
    %42 = vmatpush1.msra.mxu0 %v24
    %43 = vmatprep.subr.mxu0 0.0
    %44 = vmatpush1.msra.mxu0 %v39
    %45 = vmatprep.subr.mxu0 0.0
    %46 = vmatpush1.msra.mxu0 0.0
    %47 = vmatprep.subr.mxu0 0.0
    %48 = vmatpush1.msra.mxu0 0.0
    %49 = vmatprep.subr.mxu0 0.0
    %50 = vmatpush1.msra.mxu0 0.0
    %51 = vmatprep.subr.mxu0 0.0
    %52 = vmatpush1.msra.mxu0 0.0
    %53 = vmatprep.subr.mxu0 0.0
    %54 = vmatpush1.msra.mxu0 0.0
    %55 = vmatprep.subr.mxu0 0.0
    %56 = vmatpush1.msra.mxu0 0.0
    %57 = vmatprep.subr.mxu0 0.0
    %58 = vmatpush1.msra.mxu0 0.0
    %59 = vmatprep.subr.mxu0 0.0
    %60 = vmatpush1.msra.mxu0 0.0
    %61 = vmatprep.subr.mxu0 0.0
    %62 = vmatpush1.msra.mxu0 0.0
    %63 = vmatprep.subr.mxu0 0.0
    %64 = vmatpush1.msra.mxu0 0.0
    %65 = vmatprep.subr.mxu0 0.0
    %66 = vmatpush1.msra.mxu0 0.0
    %67 = vmatprep.subr.mxu0 0.0
    %68 = vmatpush1.msra.mxu0 0.0
    %69 = vmatprep.subr.mxu0 0.0
    %70 = vmatpush1.msra.mxu0 0.0
    %71 = vmatprep.subr.mxu0 0.0
    %72 = vmatpush1.msra.mxu0 0.0
    %73 = vmatprep.subr.mxu0 0.0
    %74 = vmatpush1.msra.mxu0 0.0
    %75 = vmatprep.subr.mxu0 0.0
    %76 = vmatpush1.msra.mxu0 0.0
    %77 = vmatprep.subr.mxu0 0.0
    %78 = vmatpush1.msra.mxu0 0.0
    %79 = vmatprep.subr.mxu0 0.0
    %80 = vmatpush1.msra.mxu0 0.0
    %81 = vmatprep.subr.mxu0 0.0
    %82 = vmatpush1.msra.mxu0 0.0
    %83 = vmatprep.subr.mxu0 0.0
    %84 = vmatpush1.msra.mxu0 0.0
    %85 = vmatprep.subr.mxu0 0.0
    %86 = vmatpush1.msra.mxu0 0.0
    %87 = vmatprep.subr.mxu0 0.0
    %88 = vmatpush1.msra.mxu0 0.0
    %89 = vmatprep.subr.mxu0 0.0
    %90 = vmatpush1.msra.mxu0 0.0
    %91 = vmatprep.subr.mxu0 0.0
    %92 = vmatpush1.msra.mxu0 0.0
    %93 = vmatprep.subr.mxu0 0.0
    %94 = vmatpush1.msra.mxu0 0.0
    %95 = vmatprep.subr.mxu0 0.0
    %96 = vmatpush1.msra.mxu0 0.0
    %97 = vmatprep.subr.mxu0 0.0
    %98 = vmatpush1.msra.mxu0 0.0
    %99 = vmatprep.subr.mxu0 0.0
    %100 = vmatpush1.msra.mxu0 0.0
    %101 = vmatprep.subr.mxu0 0.0
    %102 = vmatpush1.msra.mxu0 0.0
    %103 = vmatprep.subr.mxu0 0.0
    %104 = vmatpush1.msra.mxu0 0.0
    %105 = vmatprep.mubr.f32.mxu0 0.0
    %106 = vmatmul.mubr.f32.gmra.mrb[0].mxu0 %v35
    %v107 = vpop.f32.mrb[0].mxu0
    %v108 = vadd.f32 %v31, %v107
    %v109 = vpop.f32.mrb[0].mxu0
    %110 = vdwg.mxu0
    %vm111 = vcmask 33792
    %112 = vst.msk [vmem:[#allocation2] sm:$0x3] %vm111, %v108
    // Predicated region
    $region14: #{model_forward.1} parent=1 // pred_check
      _
    $region15: #{model_forward.1} parent=1 // pred_check_branch
      %114 = sbr.rel (0) target = $region17
    $region16: #{model_forward.1} parent=1 // pred_region
      %s116 = ssub.s32 32, 32
      %117 = vsyncadd [#allocation3], %s116
      %s119 = sshll.u32 [#allocation2], 4
      %s120 = int_to_ptr.vmem [resolvable:$true] %s119
      %122 = dma.vmem_to_hbm [thread:$0]  %s120, 32, %s3, [#allocation3]
    $region17: #{model_forward.1} parent=1 // pred_fallthru
      _
    // Predicated region
    $region18: #{model_forward.1} parent=1 // pred_check
      _
    $region19: #{model_forward.1} parent=1 // pred_check_branch
      %124 = sbr.rel (0) target = $region21
    $region20: #{model_forward.1} parent=1 // pred_region
      %125 = dma.done [#allocation3], 32
    $region21: #{model_forward.1} parent=1 // pred_fallthru
      _
    %126 = vsyncpa [#allocation3], 1

</llo_original>
